<compile_context>
chip_gen: v7x
topology: tpu7x:2x2x1
jax: 0.10.0
libtpu: 0.0.40
codegen_flags: <defaults>
</compile_context>

<pallas_src>
import functools

import jax
import jax.numpy as jnp
from jax import lax
from jax.experimental import pallas as pl
from jax.experimental.pallas import tpu as pltpu


def _round_up(x, m):
    return ((x + m - 1) // m) * m


def _focal_loss_kernel(logits_ref, targets_ref, out_ref, acc_ref,
                       *, gamma, n_total, tile_n):
    i = pl.program_id(0)

    @pl.when(i == 0)
    def _init():
        acc_ref[0, 0] = jnp.float32(0.0)

    logits = logits_ref[...].astype(jnp.float32)            # (tile_n, C)
    tgt = targets_ref[...]                                   # (tile_n, 1) int32
    tn, c = logits.shape

    # numerically-stable cross entropy:  ce = logsumexp(z) - z[target]
    m = jnp.max(logits, axis=-1, keepdims=True)               # (tile_n, 1)
    z = logits - m                                             # (tile_n, C)
    lse = jnp.log(jnp.sum(jnp.exp(z), axis=-1, keepdims=True))  # (tile_n, 1)
    # target-logit select without an explicit one-hot multiply (avoids the
    # bool->f32 convert, the extra (tile_n,C) multiply, and 0*(-inf)=NaN).
    col = lax.broadcasted_iota(jnp.int32, (tn, c), 1)
    tgt_logit = jnp.sum(jnp.where(col == tgt, z, 0.0), axis=-1, keepdims=True)
    ce = lse - tgt_logit                                       # (tile_n, 1)

    # focal modulation (alpha is None in the default module)
    pt = jnp.clip(jnp.exp(-ce), 1e-7, 1.0 - 1e-7)
    one_minus_pt = 1.0 - pt
    if float(gamma) == 2.0:
        mod = jnp.square(one_minus_pt)                         # VALU, not pow
    elif float(gamma) == int(gamma):
        mod = lax.integer_pow(one_minus_pt, int(gamma))
    else:
        mod = one_minus_pt ** gamma
    focal = mod * ce                                           # (tile_n, 1)

    # mask out rows that only exist because N was padded up to a tile multiple
    row = i * tile_n + lax.broadcasted_iota(jnp.int32, (tn, 1), 0)
    focal = jnp.where(row < n_total, focal, 0.0)

    acc_ref[0, 0] += jnp.sum(focal)

    @pl.when(i == pl.num_programs(0) - 1)
    def _finalize():
        # divide by the GLOBAL N (not the per-block row count)
        out_ref[0, 0] = acc_ref[0, 0] / jnp.float32(n_total)


def focal_loss(inputs, targets, gamma=2.0, tile_n=None):
    """inputs: (N, C) float logits (f32 or bf16); targets: (N,) int labels."""
    n, c = inputs.shape
    itemsize = jnp.dtype(inputs.dtype).itemsize

    if tile_n is None:
        # Keep each pipeline buffer of logits <= ~8 MiB so the double-buffered
        # tiles fit comfortably under the 32 MiB scoped VMEM limit on every
        # generation (v7x has only 64 MiB physical VMEM per TensorCore).
        per_buf_budget = 8 * 1024 * 1024
        tile_n = per_buf_budget // max(1, c * itemsize)
        tile_n = max(8, min(1024, (tile_n // 8) * 8))
    tile_n = min(tile_n, _round_up(n, 8))
    tile_n = max(8, (tile_n // 8) * 8)

    n_pad = _round_up(n, tile_n)
    if n_pad != n:
        inputs = jnp.pad(inputs, ((0, n_pad - n), (0, 0)))
        targets = jnp.pad(targets, (0, n_pad - n))
    tgt2d = targets.astype(jnp.int32).reshape(n_pad, 1)

    grid = (n_pad // tile_n,)
    # TODO(synk): for very large C (vocab-sized), add an inner grid axis over
    # class blocks with an online logsumexp instead of a single (tile_n, C) tile.
    # TODO(synk): on v7x, split the batch into 2 "parallel" partial sums (one per
    # TensorCore) and reduce the partials in the wrapper for ~2x HBM bandwidth.
    out = pl.pallas_call(
        functools.partial(_focal_loss_kernel, gamma=float(gamma),
                          n_total=n, tile_n=tile_n),
        grid=grid,
        out_shape=jax.ShapeDtypeStruct((1, 1), jnp.float32),
        in_specs=[
            pl.BlockSpec((tile_n, c), lambda i: (i, 0)),   # logits tile
            pl.BlockSpec((tile_n, 1), lambda i: (i, 0)),   # targets tile
        ],
        out_specs=pl.BlockSpec(memory_space=pltpu.SMEM),   # scalar, resident
        scratch_shapes=[pltpu.SMEM((1, 1), jnp.float32)],  # running sum
        compiler_params=pltpu.CompilerParams(
            dimension_semantics=("arbitrary",),            # reduction axis
            vmem_limit_bytes=32 * 1024 * 1024,
        ),
    )(inputs, tgt2d)
    return out[0, 0]


def focal_loss_ref(inputs, targets, gamma=2.0):
    """Pure-JAX reference matching the PyTorch module (alpha=None)."""
    logits = inputs.astype(jnp.float32)
    logz = jax.nn.logsumexp(logits, axis=-1)
    tgt_logit = jnp.take_along_axis(logits, targets[:, None], axis=-1)[:, 0]
    ce = logz - tgt_logit
    pt = jnp.clip(jnp.exp(-ce), 1e-7, 1.0 - 1e-7)
    return jnp.mean((1.0 - pt) ** gamma * ce)


if __name__ == "__main__":
    key = jax.random.PRNGKey(0)
    k1, k2, k3, k4 = jax.random.split(key, 4)

    # Case 1: small batch, single tile.
    N, C = 8, 16
    inputs = jax.random.normal(k1, (N, C), dtype=jnp.float32)
    targets = jax.random.randint(k2, (N,), 0, C, dtype=jnp.int32)
    loss = jax.block_until_ready(focal_loss(inputs, targets, gamma=2.0))
    ref = focal_loss_ref(inputs, targets, gamma=2.0)
    assert jnp.allclose(loss, ref, atol=1e-5, rtol=1e-5), (loss, ref)

    # Case 2: N not a multiple of the tile -> exercises padding mask and the
    # multi-step grid accumulation (tile_n=8, grid of 2 steps).
    N2, C2 = 13, 16
    inputs2 = jax.random.normal(k3, (N2, C2), dtype=jnp.float32)
    targets2 = jax.random.randint(k4, (N2,), 0, C2, dtype=jnp.int32)
    loss2 = jax.block_until_ready(focal_loss(inputs2, targets2, gamma=2.0, tile_n=8))
    ref2 = focal_loss_ref(inputs2, targets2, gamma=2.0)
    assert jnp.allclose(loss2, ref2, atol=1e-5, rtol=1e-5), (loss2, ref2)

    print("KERNEL_OK")
</pallas_src>

<mosaic_0001>
module attributes {stable_mosaic.version = 11 : i64} {
  func.func @_focal_loss_kernel(%arg0: i32, %arg1: memref<8x16xf32, #tpu.memory_space<vmem>>, %arg2: memref<8x1xi32, #tpu.memory_space<vmem>>, %arg3: memref<1x1xf32, #tpu.memory_space<smem>>, %arg4: memref<1x1xf32, #tpu.memory_space<smem>>) attributes {dimension_semantics = [#tpu.dimension_semantics<arbitrary>], iteration_bounds = array<i64: 1>, scalar_prefetch = 0 : i64, scratch_operands = 1 : i64, tpu.core_type = #tpu.core_type<tc>, window_params = [{transform_indices = @transform_0, window_bounds = array<i64: 8, 16>}, {transform_indices = @transform_1, window_bounds = array<i64: 8, 1>}, {transform_indices = @transform_2, window_bounds = array<i64: 1, 1>}]} {
    %c0_i32 = arith.constant 0 : i32
    %0 = arith.cmpi eq, %arg0, %c0_i32 : i32
    %1 = arith.extui %0 : i1 to i32
    %c0_i32_0 = arith.constant 0 : i32
    %2 = arith.cmpi ne, %1, %c0_i32_0 : i32
    scf.if %2 {
      %cst_20 = arith.constant 0.000000e+00 : f32
      %c0_21 = arith.constant 0 : index
      %c0_22 = arith.constant 0 : index
      %50 = memref.load %arg4[%c0_21, %c0_22] : memref<1x1xf32, #tpu.memory_space<smem>>
      memref.store %cst_20, %arg4[%c0_21, %c0_22] : memref<1x1xf32, #tpu.memory_space<smem>>
    } else {
    }
    %c0 = arith.constant 0 : index
    %c0_1 = arith.constant 0 : index
    %3 = vector.load %arg1[%c0, %c0_1] : memref<8x16xf32, #tpu.memory_space<vmem>>, vector<8x16xf32>
    %c0_2 = arith.constant 0 : index
    %c0_3 = arith.constant 0 : index
    %4 = vector.load %arg2[%c0_2, %c0_3] : memref<8x1xi32, #tpu.memory_space<vmem>>, vector<8x1xi32>
    %cst = arith.constant dense<0xFF800000> : vector<8xf32>
    %5 = vector.multi_reduction <maximumf>, %3, %cst [1] : vector<8x16xf32> to vector<8xf32>
    %6 = vector.shape_cast %5 : vector<8xf32> to vector<8x1xf32>
    %7 = vector.broadcast %6 : vector<8x1xf32> to vector<8x16xf32>
    %8 = arith.subf %3, %7 : vector<8x16xf32>
    %9 = math.exp %8 : vector<8x16xf32>
    %cst_4 = arith.constant dense<0.000000e+00> : vector<8xf32>
    %10 = vector.multi_reduction <add>, %9, %cst_4 [1] : vector<8x16xf32> to vector<8xf32>
    %11 = vector.shape_cast %10 : vector<8xf32> to vector<8x1xf32>
    %12 = math.log %11 : vector<8x1xf32>
    %13 = tpu.iota {dimensions = array<i32: 1>} : vector<8x16xi32>
    %14 = vector.broadcast %4 : vector<8x1xi32> to vector<8x16xi32>
    %15 = arith.cmpi eq, %13, %14 : vector<8x16xi32>
    %cst_5 = arith.constant 0.000000e+00 : f32
    %16 = vector.broadcast %cst_5 : f32 to vector<8x16xf32>
    %17 = arith.select %15, %8, %16 : vector<8x16xi1>, vector<8x16xf32>
    %cst_6 = arith.constant dense<0.000000e+00> : vector<8xf32>
    %18 = vector.multi_reduction <add>, %17, %cst_6 [1] : vector<8x16xf32> to vector<8xf32>
    %19 = vector.shape_cast %18 : vector<8xf32> to vector<8x1xf32>
    %20 = arith.subf %12, %19 : vector<8x1xf32>
    %cst_7 = arith.constant 0.000000e+00 : f32
    %21 = vector.broadcast %cst_7 : f32 to vector<8x1xf32>
    %22 = arith.subf %21, %20 : vector<8x1xf32>
    %23 = math.exp %22 : vector<8x1xf32>
    %cst_8 = arith.constant 1.000000e-07 : f32
    %cst_9 = arith.constant 0.99999988 : f32
    %24 = vector.broadcast %cst_8 : f32 to vector<8x1xf32>
    %25 = arith.maximumf %24, %23 : vector<8x1xf32>
    %26 = vector.broadcast %cst_9 : f32 to vector<8x1xf32>
    %27 = arith.minimumf %26, %25 : vector<8x1xf32>
    %cst_10 = arith.constant 1.000000e+00 : f32
    %28 = vector.broadcast %cst_10 : f32 to vector<8x1xf32>
    %29 = arith.subf %28, %27 : vector<8x1xf32>
    %30 = arith.mulf %29, %29 : vector<8x1xf32>
    %31 = arith.mulf %30, %20 : vector<8x1xf32>
    %c8_i32 = arith.constant 8 : i32
    %32 = arith.muli %arg0, %c8_i32 : i32
    %33 = tpu.iota {dimensions = array<i32: 0>} : vector<8x1xi32>
    %34 = vector.broadcast %32 : i32 to vector<8x1xi32>
    %35 = arith.addi %34, %33 : vector<8x1xi32>
    %c8_i32_11 = arith.constant 8 : i32
    %36 = vector.broadcast %c8_i32_11 : i32 to vector<8x1xi32>
    %37 = arith.cmpi slt, %35, %36 : vector<8x1xi32>
    %cst_12 = arith.constant 0.000000e+00 : f32
    %38 = vector.broadcast %cst_12 : f32 to vector<8x1xf32>
    %39 = arith.select %37, %31, %38 : vector<8x1xi1>, vector<8x1xf32>
    %c0_13 = arith.constant 0 : index
    %c0_14 = arith.constant 0 : index
    %40 = memref.load %arg4[%c0_13, %c0_14] : memref<1x1xf32, #tpu.memory_space<smem>>
    %41 = vector.shape_cast %39 : vector<8x1xf32> to vector<1x8x1xf32>
    %cst_15 = arith.constant dense<0.000000e+00> : vector<1xf32>
    %42 = vector.multi_reduction <add>, %41, %cst_15 [1, 2] : vector<1x8x1xf32> to vector<1xf32>
    %43 = vector.shape_cast %42 : vector<1xf32> to vector<1x1x1xf32>
    %44 = vector.extract %43[0, 0, 0] : f32 from vector<1x1x1xf32>
    %45 = arith.addf %40, %44 : f32
    %c0_16 = arith.constant 0 : index
    %c0_17 = arith.constant 0 : index
    %46 = memref.load %arg4[%c0_16, %c0_17] : memref<1x1xf32, #tpu.memory_space<smem>>
    memref.store %45, %arg4[%c0_16, %c0_17] : memref<1x1xf32, #tpu.memory_space<smem>>
    %c0_i32_18 = arith.constant 0 : i32
    %47 = arith.cmpi eq, %arg0, %c0_i32_18 : i32
    %48 = arith.extui %47 : i1 to i32
    %c0_i32_19 = arith.constant 0 : i32
    %49 = arith.cmpi ne, %48, %c0_i32_19 : i32
    scf.if %49 {
      %c0_20 = arith.constant 0 : index
      %c0_21 = arith.constant 0 : index
      %50 = memref.load %arg4[%c0_20, %c0_21] : memref<1x1xf32, #tpu.memory_space<smem>>
      %cst_22 = arith.constant 8.000000e+00 : f32
      %51 = arith.divf %50, %cst_22 : f32
      %c0_23 = arith.constant 0 : index
      %c0_24 = arith.constant 0 : index
      %52 = memref.load %arg3[%c0_23, %c0_24] : memref<1x1xf32, #tpu.memory_space<smem>>
      memref.store %51, %arg3[%c0_23, %c0_24] : memref<1x1xf32, #tpu.memory_space<smem>>
    } else {
    }
    return
  }
  func.func @transform_0(%arg0: i32) -> (i32, i32) {
    %c0_i32 = arith.constant 0 : i32
    %c0_i32_0 = arith.constant 0 : i32
    return %arg0, %c0_i32 : i32, i32
  }
  func.func @transform_1(%arg0: i32) -> (i32, i32) {
    %c0_i32 = arith.constant 0 : i32
    %c0_i32_0 = arith.constant 0 : i32
    return %arg0, %c0_i32 : i32, i32
  }
  func.func @transform_2(%arg0: i32) -> (i32, i32) {
    %c0_i32 = arith.constant 0 : i32
    %c0_i32_0 = arith.constant 0 : i32
    %c0_i32_1 = arith.constant 0 : i32
    return %c0_i32, %c0_i32_0 : i32, i32
  }
}

</mosaic_0001>

<llo_original>
// kernel: tpu_custom_call.1
$region0: #{tpu_custom_call.1}
  #allocation0 [shape = 'u32[]', space=smem, size = 0x4, offset = 0x4, fixed_abs, tag = 'smem constant byte address 0x4 - core index']
  #allocation1 [shape = 'u32[144,128]{1,0:T(1,128)}', space=vmem, size = 0x12000, scoped, tag = 'internal scratch']
  #allocation2 [shape = 'f32[1,1]{1,0:T(1,128)}', space=smem, size = 0x200, scoped, tag = 'scratch operand']
  %s0 = inlined_call_operand.vmem [shape: f32[8,16], index: 0, kind: input, shape index: {}]
  %s1 = inlined_call_operand.vmem [shape: s32[8,1], index: 1, kind: input, shape index: {}]
  %s2 = inlined_call_operand.hbm [shape: f32[1,1], index: 2, kind: output, shape index: {}]
  %s3 = sld [smem:[#allocation0]]
  $region26: #{tpu_custom_call.1} parent=0
    _
  %s5 = ssub.s32 1, %s3
  %s6 = scalar_select 0, %s5, %s3
  $region1: #{tpu_custom_call.1} parent=0
    #allocation3 [shape = 'u8[512]{0}', space=smem, size = 0x200, scoped, tag = 'output window, operand 0, single buffered']
    #allocation4 [shape = 's32[1]{0}', space=sflag, size = 0x4, scoped, tag = 'scoped memory for tpu_custom_call.1']
    %7 = vsyncpa [#allocation4], 0
    // Predicated region
    $region2: #{tpu_custom_call.1} parent=1 // pred_check
      _
    $region3: #{tpu_custom_call.1} parent=1 // pred_check_branch
      %9 = sbr.rel (0) target = $region5
    $region4: #{tpu_custom_call.1} parent=1 // pred_region
      _
    $region5: #{tpu_custom_call.1} parent=1 // pred_fallthru
      _
    // Predicated region
    $region6: #{tpu_custom_call.1} parent=1 // pred_check
      _
    $region7: #{tpu_custom_call.1} parent=1 // pred_check_branch
      %11 = sbr.rel (0) target = $region9
    $region8: #{tpu_custom_call.1} parent=1 // pred_region
      _
    $region9: #{tpu_custom_call.1} parent=1 // pred_fallthru
      _
    %p12 = scmp.eq.s32.totalorder 0, 0
    // Predicated region
    $region10: #{tpu_custom_call.1} parent=1 // pred_check
      %p13 = pneg %p12
    $region11: #{tpu_custom_call.1} parent=1 // pred_check_branch
      %15 = sbr.rel (%p13) target = $region13
    $region12: #{tpu_custom_call.1} parent=1 // pred_region
      %s16 = scalar_lea.smem [#allocation2], 0
      %17 = sst [smem:[%s16]] 0.0
    $region13: #{tpu_custom_call.1} parent=1 // pred_fallthru
      _
    %v18 = vld [vmem:[%s0] sm:$0xff]
    %v19 = vld [vmem:[%s1] sm:$0xff]
    %vm20 = vcmask 130048
    %v21 = vsel %vm20, %v18, -inf
    %22 = vmax.xlane.f32.xlu0 %v21
    %v23 = vpop.xlane.xlu0 %22
    %v24 = vsub.f32 %v18, %v23
    %v25 = vmul.f32 %v24, 1.442695
    %v26 = vpow.pop %v25
    %v27 = vsel %vm20, %v26, 0.0
    %28 = vadd.xlane.f32.xlu0 %v27
    %v29 = vpop.xlane.xlu0 %28
    %v30 = vlog2.pop %v29
    %v31 = vmul.f32 %v30, 0.6931472
    %v32 = vlaneseq
    %v33 = vand.u32 %v32, 127
    %34 = vset.pattern.permute.xlu0 0
    %35 = vperm.xlu0 %34, %v19
    %v36 = vpop.permute.xlu0 %35
    %vm37 = vcmp.eq.s32.totalorder %v33, %v36
    %v38 = vsel %vm37, %v24, 0.0
    %v39 = vsel %vm20, %v38, 0.0
    %40 = vadd.xlane.f32.xlu0 %v39
    %v41 = vpop.xlane.xlu0 %40
    %v42 = vsub.f32 %v31, %v41
    %v43 = vsub.f32 0.0, %v42
    %v44 = vmul.f32 %v43, 1.442695
    %v45 = vpow.pop %v44
    %v46 = vmax.f32 %v45, 1e-07
    %v47 = vmin.f32 %v46, 0.9999999
    %v48 = vsub.f32 1.0, %v47
    %v49 = vmul.f32 %v48, %v48
    %v50 = vmul.f32 %v49, %v42
    %s51 = smul.u32 0, 8
    %v52 = vlaneseq
    %v53 = vshrl.u32 %v52, 7
    %v54 = vstv %s51
    %v55 = vadd.s32 %v54, %v53
    %vm56 = vcmp.lt.s32.totalorder %v55, 8
    %v57 = vsel %vm56, %v50, 0.0
    %s58 = sld [smem:[#allocation2]]
    %vm59 = vcmask 7168
    %v60 = vsel %vm59, %v57, 0.0
    %61 = vadd.xlane.f32.xlu0 %v60
    %v62 = vpop.xlane.xlu0 %61
    %v63 = vrot.slane %v62, 4
    %v64 = vadd.f32 %v62, %v63
    %v65 = vrot.slane %v64, 2
    %v66 = vadd.f32 %v64, %v65
    %v67 = vrot.slane %v66, 1
    %v68 = vadd.f32 %v66, %v67
    %s69 = vtos %v68
    %s70 = sadd.f32 %s58, %s69
    %s71 = scalar_lea.smem [#allocation2], 0
    %72 = sst [smem:[%s71]] %s70
    // Predicated region
    $region14: #{tpu_custom_call.1} parent=1 // pred_check
      %p73 = pneg %p12
    $region15: #{tpu_custom_call.1} parent=1 // pred_check_branch
      %75 = sbr.rel (%p73) target = $region17
    $region16: #{tpu_custom_call.1} parent=1 // pred_region
      %s76 = sld [smem:[#allocation2]]
      %v77 = vrcp.pop 8.0
      %s78 = vtos %v77
      %s79 = smul.f32 %s76, %s78
      %s80 = scalar_lea.smem [#allocation3], 0
      %81 = sst [smem:[%s80]] %s79
    $region17: #{tpu_custom_call.1} parent=1 // pred_fallthru
      _
    // Predicated region
    $region18: #{tpu_custom_call.1} parent=1 // pred_check
      _
    $region19: #{tpu_custom_call.1} parent=1 // pred_check_branch
      %83 = sbr.rel (0) target = $region21
    $region20: #{tpu_custom_call.1} parent=1 // pred_region
      %s85 = ssub.s32 16, 16
      %86 = vsyncadd [#allocation4], %s85
      %89 = dma.smem_to_hbm [#allocation3], 16, %s2, [#allocation4]
    $region21: #{tpu_custom_call.1} parent=1 // pred_fallthru
      _
    // Predicated region
    $region22: #{tpu_custom_call.1} parent=1 // pred_check
      _
    $region23: #{tpu_custom_call.1} parent=1 // pred_check_branch
      %91 = sbr.rel (0) target = $region25
    $region24: #{tpu_custom_call.1} parent=1 // pred_region
      %92 = dma.done [#allocation4], 16
    $region25: #{tpu_custom_call.1} parent=1 // pred_fallthru
      _
    %93 = sfence
    %94 = vsyncpa [#allocation4], 1

</llo_original>
